<compile_context>
chip_gen: v5e
topology: v5e:2x2
jax: 0.10.0
libtpu: 0.0.40
codegen_flags: <defaults>
</compile_context>

<pallas_src>
import functools

import jax
import jax.numpy as jnp
from jax.experimental import pallas as pl
from jax.experimental.pallas import tpu as pltpu


def _round_up(x: int, m: int) -> int:
    return ((x + m - 1) // m) * m


def _patch_embed_matmul_kernel(x_ref, w_ref, b_ref, o_ref):
    # x_ref: (tm, Kp) bf16 flattened patches
    # w_ref: (Kp, Dp) bf16 projection weight (resident)
    # b_ref: (1, Dp)  f32 bias (resident)
    # o_ref: (tm, Dp) f32 output
    acc = jnp.dot(x_ref[...], w_ref[...], preferred_element_type=jnp.float32)
    o_ref[...] = (acc + b_ref[...]).astype(o_ref.dtype)


@functools.partial(jax.jit, static_argnames=("patch_size", "tile_m", "compute_dtype"))
def vit_patch_embeddings(pixel_values, weight, bias, *, patch_size, tile_m=256,
                         compute_dtype=jnp.bfloat16):
    """
    pixel_values: (B, C, H, W)  float32  (NCHW, like the PyTorch module)
    weight:       (D, C, P, P)  float32  (PyTorch Conv2d weight layout)
    bias:         (D,)          float32
    returns:      (B, num_patches, D) in pixel_values.dtype
    """
    B, C, H, W = pixel_values.shape
    D = weight.shape[0]
    P = patch_size
    assert H % P == 0 and W % P == 0, "image size must be divisible by patch size"
    Hp, Wp = H // P, W // P
    num_patches = Hp * Wp
    K = C * P * P
    M = B * num_patches
    out_dtype = pixel_values.dtype

    # --- layout glue: extract non-overlapping patches, flatten in (c, kh, kw) order ---
    # (B, C, Hp, P, Wp, P) -> (B, Hp, Wp, C, P, P) -> (M, K)
    x = pixel_values.reshape(B, C, Hp, P, Wp, P)
    x = jnp.transpose(x, (0, 2, 4, 1, 3, 5))
    x = x.reshape(M, K)

    # Conv2d(stride=kernel) == matmul against weight flattened as (D, K)
    w = weight.reshape(D, K).T                      # (K, D)
    b = bias.reshape(1, D).astype(jnp.float32)      # (1, D)

    # --- padding to hardware-friendly shapes (no-ops for production ViT configs) ---
    Kp = _round_up(K, 128)                          # full MXU columns
    Dp = _round_up(D, 128)                          # lane-dense (unmasked) stores
    tm = min(tile_m, _round_up(M, 8))               # cap tile; never a full-M monster block
    Mp = _round_up(M, tm)                           # pad rows instead of full-M fallback

    x = jnp.pad(x, ((0, Mp - M), (0, Kp - K))).astype(compute_dtype)
    w = jnp.pad(w, ((0, Kp - K), (0, Dp - D))).astype(compute_dtype)
    b = jnp.pad(b, ((0, 0), (0, Dp - D)))

    out_itemsize = jnp.dtype(out_dtype).itemsize
    cost = pl.CostEstimate(
        flops=2 * Mp * Kp * Dp,
        transcendentals=0,
        bytes_accessed=(x.size * jnp.dtype(compute_dtype).itemsize
                        + w.size * jnp.dtype(compute_dtype).itemsize
                        + b.size * 4
                        + Mp * Dp * out_itemsize),
    )

    out = pl.pallas_call(
        _patch_embed_matmul_kernel,
        out_shape=jax.ShapeDtypeStruct((Mp, Dp), out_dtype),
        grid_spec=pltpu.PrefetchScalarGridSpec(
            num_scalar_prefetch=0,
            grid=(Mp // tm,),
            in_specs=[
                pl.BlockSpec((tm, Kp), lambda i: (i, 0)),   # streaming patch rows
                pl.BlockSpec((Kp, Dp), lambda i: (0, 0)),   # projection weight (resident)
                pl.BlockSpec((1, Dp), lambda i: (0, 0)),    # bias (resident)
            ],
            out_specs=pl.BlockSpec((tm, Dp), lambda i: (i, 0)),
        ),
        compiler_params=pltpu.CompilerParams(
            dimension_semantics=("parallel",),              # shards row blocks across TCs
        ),
        cost_estimate=cost,
    )(x, w, b)

    # Strip padding, restore (B, num_patches, D) — matches projection(x).flatten(2).transpose(1,2)
    return out[:M, :D].reshape(B, num_patches, D)


if __name__ == "__main__":
    # Small config: image 16x16, patch 4 -> 16 patches, channels 4, hidden 32.
    B, C, H, W = 2, 4, 16, 16
    P = 4
    D = 32

    key = jax.random.PRNGKey(0)
    k_x, k_w, k_b = jax.random.split(key, 3)

    pixel_values = jax.random.normal(k_x, (B, C, H, W), dtype=jnp.float32)
    weight = jax.random.normal(k_w, (D, C, P, P), dtype=jnp.float32) * 0.02
    bias = jax.random.normal(k_b, (D,), dtype=jnp.float32) * 0.02

    out = vit_patch_embeddings(pixel_values, weight, bias, patch_size=P)
    out = jax.block_until_ready(out)

    # Reference check against lax conv (same semantics as the PyTorch module).
    # Inputs are rounded to bf16 to match the kernel's bf16-input / f32-accumulate mode.
    x_ref = pixel_values.astype(jnp.bfloat16).astype(jnp.float32)
    w_ref = weight.astype(jnp.bfloat16).astype(jnp.float32)
    ref = jax.lax.conv_general_dilated(
        x_ref, w_ref, window_strides=(P, P), padding="VALID",
        dimension_numbers=("NCHW", "OIHW", "NCHW"),
        precision=jax.lax.Precision.HIGHEST)
    ref = ref + bias[None, :, None, None]
    ref = ref.reshape(B, D, -1).transpose(0, 2, 1)  # flatten(2).transpose(1,2)

    assert out.shape == (B, (H // P) * (W // P), D)
    assert jnp.allclose(out, ref, atol=2e-3, rtol=2e-3)

    print("KERNEL_OK")
</pallas_src>

<mosaic_0001>
module attributes {stable_mosaic.version = 11 : i64} {
  func.func @_patch_embed_matmul_kernel(%arg0: i32, %arg1: memref<32x128xbf16, #tpu.memory_space<vmem>>, %arg2: memref<128x128xbf16, #tpu.memory_space<vmem>>, %arg3: memref<1x128xf32, #tpu.memory_space<vmem>>, %arg4: memref<32x128xf32, #tpu.memory_space<vmem>>) attributes {dimension_semantics = [#tpu.dimension_semantics<parallel>], iteration_bounds = array<i64: 1>, scalar_prefetch = 0 : i64, scratch_operands = 0 : i64, tpu.core_type = #tpu.core_type<tc>, window_params = [{transform_indices = @transform_0, window_bounds = array<i64: 32, 128>}, {pipeline_mode = #tpu.pipeline_mode<synchronous>, transform_indices = @transform_1, window_bounds = array<i64: 128, 128>}, {pipeline_mode = #tpu.pipeline_mode<synchronous>, transform_indices = @transform_2, window_bounds = array<i64: 1, 128>}, {transform_indices = @transform_3, window_bounds = array<i64: 32, 128>}]} {
    %c0 = arith.constant 0 : index
    %c0_0 = arith.constant 0 : index
    %0 = vector.load %arg1[%c0, %c0_0] : memref<32x128xbf16, #tpu.memory_space<vmem>>, vector<32x128xbf16>
    %c0_1 = arith.constant 0 : index
    %c0_2 = arith.constant 0 : index
    %1 = vector.load %arg2[%c0_1, %c0_2] : memref<128x128xbf16, #tpu.memory_space<vmem>>, vector<128x128xbf16>
    %cst = arith.constant dense<0.000000e+00> : vector<32x128xf32>
    %2 = tpu.matmul %0, %1, %cst {dimension_numbers = #tpu.dot_dimension_numbers<[1], [0], [0], [1], [0, 0, 1, 1], [], []>} : vector<32x128xbf16>, vector<128x128xbf16>, vector<32x128xf32> -> vector<32x128xf32>
    %c0_3 = arith.constant 0 : index
    %c0_4 = arith.constant 0 : index
    %3 = vector.load %arg3[%c0_3, %c0_4] : memref<1x128xf32, #tpu.memory_space<vmem>>, vector<1x128xf32>
    %4 = vector.broadcast %3 : vector<1x128xf32> to vector<32x128xf32>
    %5 = arith.addf %2, %4 : vector<32x128xf32>
    %c0_5 = arith.constant 0 : index
    %c0_6 = arith.constant 0 : index
    %6 = vector.load %arg4[%c0_5, %c0_6] : memref<32x128xf32, #tpu.memory_space<vmem>>, vector<32x128xf32>
    tpu.vector_store %arg4[%c0_5, %c0_6], %5 {strides = array<i32>} : memref<32x128xf32, #tpu.memory_space<vmem>>, vector<32x128xf32>,
    return
  }
  func.func @transform_0(%arg0: i32) -> (i32, i32) {
    %c0_i32 = arith.constant 0 : i32
    %c0_i32_0 = arith.constant 0 : i32
    return %arg0, %c0_i32 : i32, i32
  }
  func.func @transform_1(%arg0: i32) -> (i32, i32) {
    %c0_i32 = arith.constant 0 : i32
    %c0_i32_0 = arith.constant 0 : i32
    %c0_i32_1 = arith.constant 0 : i32
    return %c0_i32, %c0_i32_0 : i32, i32
  }
  func.func @transform_2(%arg0: i32) -> (i32, i32) {
    %c0_i32 = arith.constant 0 : i32
    %c0_i32_0 = arith.constant 0 : i32
    %c0_i32_1 = arith.constant 0 : i32
    return %c0_i32, %c0_i32_0 : i32, i32
  }
  func.func @transform_3(%arg0: i32) -> (i32, i32) {
    %c0_i32 = arith.constant 0 : i32
    %c0_i32_0 = arith.constant 0 : i32
    return %arg0, %c0_i32 : i32, i32
  }
}

</mosaic_0001>

<llo_original>
// kernel: vit_patch_embeddings.1
$region0: #{vit_patch_embeddings.1}
  #allocation0 [shape = 'u32[]', space=smem, size = 0x4, offset = 0x4, fixed_abs, tag = 'smem constant byte address 0x4 - core index']
  #allocation1 [shape = 'u32[72,128]{1,0:T(1,128)}', space=vmem, size = 0x9000, scoped, tag = 'internal scratch']
  %s0 = inlined_call_operand.vmem [shape: bf16[32,128], index: 0, kind: input, shape index: {}]
  %s1 = inlined_call_operand.vmem [shape: bf16[128,128], index: 1, kind: input, shape index: {}]
  %s2 = inlined_call_operand.vmem [shape: f32[1,128], index: 2, kind: input, shape index: {}]
  %s3 = inlined_call_operand.hbm [shape: f32[32,128], index: 3, kind: output, shape index: {}]
  %s4 = sld [smem:[#allocation0]]
  $region22: #{vit_patch_embeddings.1} parent=0
    _
  %s6 = ssub.s32 1, %s4
  %s7 = scalar_select 0, %s6, %s4
  $region1: #{vit_patch_embeddings.1} parent=0
    #allocation2 [shape = 'u8[16384]{0}', space=vmem, size = 0x4000, scoped, tag = 'output window, operand 0, single buffered']
    #allocation3 [shape = 's32[1]{0}', space=sflag, size = 0x4, scoped, tag = 'scoped memory for vit_patch_embeddings.1']
    %8 = vsyncpa [#allocation3], 0
    // Predicated region
    $region2: #{vit_patch_embeddings.1} parent=1 // pred_check
      _
    $region3: #{vit_patch_embeddings.1} parent=1 // pred_check_branch
      %10 = sbr.rel (0) target = $region5
    $region4: #{vit_patch_embeddings.1} parent=1 // pred_region
      _
    $region5: #{vit_patch_embeddings.1} parent=1 // pred_fallthru
      _
    // Predicated region
    $region6: #{vit_patch_embeddings.1} parent=1 // pred_check
      _
    $region7: #{vit_patch_embeddings.1} parent=1 // pred_check_branch
      %12 = sbr.rel (0) target = $region9
    $region8: #{vit_patch_embeddings.1} parent=1 // pred_region
      _
    $region9: #{vit_patch_embeddings.1} parent=1 // pred_fallthru
      _
    // Predicated region
    $region10: #{vit_patch_embeddings.1} parent=1 // pred_check
      _
    $region11: #{vit_patch_embeddings.1} parent=1 // pred_check_branch
      %14 = sbr.rel (0) target = $region13
    $region12: #{vit_patch_embeddings.1} parent=1 // pred_region
      _
    $region13: #{vit_patch_embeddings.1} parent=1 // pred_fallthru
      _
    %v15 = vld [vmem:[%s0] sm:$0xf]
    %v16 = vld [vmem:[%s0 + $0x4] sm:$0xf]
    %v17 = vld [vmem:[%s0 + $0x8] sm:$0xf]
    %v18 = vld [vmem:[%s0 + $0xc] sm:$0xf]
    %v19 = vld [vmem:[%s1] sm:$0xf]
    %v20 = vld [vmem:[%s1 + $0x4] sm:$0xf]
    %v21 = vld [vmem:[%s1 + $0x8] sm:$0xf]
    %v22 = vld [vmem:[%s1 + $0xc] sm:$0xf]
    %v23 = vld [vmem:[%s1 + $0x10] sm:$0xf]
    %v24 = vld [vmem:[%s1 + $0x14] sm:$0xf]
    %v25 = vld [vmem:[%s1 + $0x18] sm:$0xf]
    %v26 = vld [vmem:[%s1 + $0x1c] sm:$0xf]
    %v27 = vld [vmem:[%s1 + $0x20] sm:$0xf]
    %v28 = vld [vmem:[%s1 + $0x24] sm:$0xf]
    %v29 = vld [vmem:[%s1 + $0x28] sm:$0xf]
    %v30 = vld [vmem:[%s1 + $0x2c] sm:$0xf]
    %v31 = vld [vmem:[%s1 + $0x30] sm:$0xf]
    %v32 = vld [vmem:[%s1 + $0x34] sm:$0xf]
    %v33 = vld [vmem:[%s1 + $0x38] sm:$0xf]
    %v34 = vld [vmem:[%s1 + $0x3c] sm:$0xf]
    %v35 = vld [vmem:[%s2] sm:$0x1]
    %v37 = vperm.slane %v35, 0
    %v43 = vunpack.c.l.b16 %v15
    %v44 = vunpack.c.l.b16 %v16
    %v45 = vunpack.c.l.b16 %v17
    %v46 = vunpack.c.l.b16 %v18
    %v47 = vpack.c.b16 %v44, %v43
    %v48 = vpack.c.b16 %v46, %v45
    %v67 = vunpack.c.l.b16 %v19
    %v68 = vunpack.c.l.b16 %v20
    %v69 = vunpack.c.l.b16 %v21
    %v70 = vunpack.c.l.b16 %v22
    %v71 = vunpack.c.l.b16 %v23
    %v72 = vunpack.c.l.b16 %v24
    %v73 = vunpack.c.l.b16 %v25
    %v74 = vunpack.c.l.b16 %v26
    %v75 = vunpack.c.l.b16 %v27
    %v76 = vunpack.c.l.b16 %v28
    %v77 = vunpack.c.l.b16 %v29
    %v78 = vunpack.c.l.b16 %v30
    %v79 = vunpack.c.l.b16 %v31
    %v80 = vunpack.c.l.b16 %v32
    %v81 = vunpack.c.l.b16 %v33
    %v82 = vunpack.c.l.b16 %v34
    %v83 = vpack.c.b16 %v68, %v67
    %v84 = vpack.c.b16 %v70, %v69
    %v85 = vpack.c.b16 %v72, %v71
    %v86 = vpack.c.b16 %v74, %v73
    %v87 = vpack.c.b16 %v76, %v75
    %v88 = vpack.c.b16 %v78, %v77
    %v89 = vpack.c.b16 %v80, %v79
    %v90 = vpack.c.b16 %v82, %v81
    %99 = vmatpush.bf16.msra.mxu0 %v90
    %100 = vmatpush.bf16.msra.mxu0 %v89
    %101 = vmatpush.bf16.msra.mxu0 %v88
    %102 = vmatpush.bf16.msra.mxu0 %v87
    %103 = vmatpush.bf16.msra.mxu0 %v86
    %104 = vmatpush.bf16.msra.mxu0 %v85
    %105 = vmatpush.bf16.msra.mxu0 %v84
    %106 = vmatpush.bf16.msra.mxu0 %v83
    %107 = vmatmul.bf16.gmra.mxu0 %v47
    %v108 = vpop.f32.mrf.mxu0
    %v109 = vadd.f32 %v37, %v108
    %v110 = vpop.f32.mrf.mxu0
    %v111 = vadd.f32 %v37, %v110
    %112 = vmatmul.bf16.gmra.mxu0 %v48
    %v113 = vpop.f32.mrf.mxu0
    %v114 = vadd.f32 %v37, %v113
    %v115 = vpop.f32.mrf.mxu0
    %v116 = vadd.f32 %v37, %v115
    %117 = vdwg.mxu0
    %118 = vst [vmem:[#allocation2] sm:$0xff] %v109
    %119 = vst [vmem:[#allocation2 + $0x8] sm:$0xff] %v111
    %120 = vst [vmem:[#allocation2 + $0x10] sm:$0xff] %v114
    %121 = vst [vmem:[#allocation2 + $0x18] sm:$0xff] %v116
    // Predicated region
    $region14: #{vit_patch_embeddings.1} parent=1 // pred_check
      _
    $region15: #{vit_patch_embeddings.1} parent=1 // pred_check_branch
      %123 = sbr.rel (0) target = $region17
    $region16: #{vit_patch_embeddings.1} parent=1 // pred_region
      %125 = vsyncadd [#allocation3], 0
      %s126 = sshll.u32 [#allocation2], 4
      %s127 = int_to_ptr.vmem [resolvable:$true] %s126
      %s128 = sshll.u32 %s3, 4
      %s129 = int_to_ptr.hbm [resolvable:$true] %s128
      %134 = dma.vmem_to_hbm [thread:$0]  %s127, 512, %s129, [#allocation3], 128, 128, 8
    $region17: #{vit_patch_embeddings.1} parent=1 // pred_fallthru
      _
    // Predicated region
    $region18: #{vit_patch_embeddings.1} parent=1 // pred_check
      _
    $region19: #{vit_patch_embeddings.1} parent=1 // pred_check_branch
      %136 = sbr.rel (0) target = $region21
    $region20: #{vit_patch_embeddings.1} parent=1 // pred_region
      %138 = dma.done [#allocation3], 512
    $region21: #{vit_patch_embeddings.1} parent=1 // pred_fallthru
      _
    %139 = vsyncpa [#allocation3], 1

</llo_original>
